<compile_context>
chip_gen: v7x
topology: tpu7x:2x2x1
jax: 0.10.0
libtpu: 0.0.40
codegen_flags: <defaults>
</compile_context>

<pallas_src>
import functools
from collections import namedtuple

import jax
import jax.numpy as jnp
from jax.experimental import pallas as pl
from jax.experimental.pallas import tpu as pltpu


def _round_up(x, m):
    return ((x + m - 1) // m) * m


# Packed parameter buffer layout (all row offsets are multiples of 8):
#   W     [Fout, Fin]  (nn.Linear orientation)              rows [w_row, +Fout)
#   b_row [1,    Fout] (for the [B, F] row-major path)       row  brow_row
#   b_col [Fout, 1   ] (for the batch-on-lanes path)         rows [bcol_row, +Fout)
_Seg = namedtuple("_Seg", ["fin", "fout", "w_row", "brow_row", "bcol_row"])


def _pack_layout(dims):
    segs, row = [], 0
    for fin, fout in zip(dims[:-1], dims[1:]):
        w_row = row
        row += _round_up(fout, 8)
        brow_row = row
        row += 8
        bcol_row = row
        row += _round_up(fout, 8)
        segs.append(_Seg(fin, fout, w_row, brow_row, bcol_row))
    n_rows = max(_round_up(row, 8), 8)
    n_cols = max(dims)
    return segs, n_rows, n_cols


def _mlp_row_major_kernel(x_ref, theta_ref, o_ref, *, segs):
    """Serving path: activations stay [B, F] (batch on sublanes), single block."""
    n = len(segs)
    y = x_ref[...].astype(jnp.float32)
    for i, s in enumerate(segs):
        w = theta_ref[s.w_row:s.w_row + s.fout, :s.fin]      # [Fout, Fin]
        b = theta_ref[s.brow_row:s.brow_row + 1, :s.fout]    # [1, Fout]
        # y @ W^T expressed directly as an MXU-native "NT" dot_general.
        y = jax.lax.dot_general(y, w, (((1,), (1,)), ((), ())),
                                preferred_element_type=jnp.float32) + b
        y = jax.nn.sigmoid(y) if i == n - 1 else jnp.maximum(y, 0.0)
    o_ref[...] = y.astype(o_ref.dtype)


def _mlp_batch_on_lanes_kernel(x_ref, theta_ref, o_ref, *, segs):
    """Throughput path: activations carried as [F, tile] (batch on 128 lanes)."""
    n = len(segs)
    s0 = segs[0]
    w0 = theta_ref[s0.w_row:s0.w_row + s0.fout, :s0.fin]      # [F1, Fin]
    b0 = theta_ref[s0.bcol_row:s0.bcol_row + s0.fout, 0:1]    # [F1, 1]
    x = x_ref[...].astype(jnp.float32)                        # [tile, Fin]
    # h = W0 @ x^T via an "NT" dot_general (contract both feature dims):
    # avoids any explicit transpose, result is [F1, tile] -> batch on lanes.
    h = jax.lax.dot_general(w0, x, (((1,), (1,)), ((), ())),
                            preferred_element_type=jnp.float32) + b0
    h = jax.nn.sigmoid(h) if n == 1 else jnp.maximum(h, 0.0)
    for i in range(1, n):
        s = segs[i]
        w = theta_ref[s.w_row:s.w_row + s.fout, :s.fin]       # [F_{i+1}, F_i]
        b = theta_ref[s.bcol_row:s.bcol_row + s.fout, 0:1]    # [F_{i+1}, 1]
        h = jax.lax.dot_general(w, h, (((1,), (0,)), ((), ())),
                                preferred_element_type=jnp.float32) + b
        h = jax.nn.sigmoid(h) if i == n - 1 else jnp.maximum(h, 0.0)
    o_ref[...] = h.astype(o_ref.dtype)                        # [Fout, tile] dense


def channel_decoder_forward(params, x, *, batch_tile=2048, small_batch_max=1024):
    """Forward pass of ChannelDecoder.

    params: dict from init_channel_decoder_params ({"dims", "packed"}).
    x:      [B, input_length] float32 activations.  Returns [B, layer_sizes[-1]].
    """
    dims = params["dims"]
    theta = params["packed"]
    segs, _, _ = _pack_layout(dims)
    B, fin = x.shape
    assert fin == dims[0], f"expected input width {dims[0]}, got {fin}"
    fout = dims[-1]

    if B <= small_batch_max:
        # Latency path: gridless, everything in VMEM, one launch, two input DMAs.
        vmem = pl.BlockSpec(memory_space=pltpu.MemorySpace.VMEM)
        kernel = functools.partial(_mlp_row_major_kernel, segs=segs)
        return pl.pallas_call(
            kernel,
            out_shape=jax.ShapeDtypeStruct((B, fout), x.dtype),
            in_specs=[vmem, vmem],
            out_specs=vmem,
        )(x, theta)

    # Throughput path: batch-tiled grid, batch-on-lanes compute.
    batch_tile = max(256, (int(batch_tile) // 256) * 256)
    # Keep >= 2 grid steps so the "parallel" axis can shard across v7x's 2 TCs.
    tile = min(batch_tile, max(256, _round_up(pl.cdiv(B, 2), 256)))
    b_pad = _round_up(B, tile)
    x_pad = jnp.pad(x, ((0, b_pad - B), (0, 0))) if b_pad != B else x
    kernel = functools.partial(_mlp_batch_on_lanes_kernel, segs=segs)

    out_fb = pl.pallas_call(
        kernel,
        out_shape=jax.ShapeDtypeStruct((fout, b_pad), x.dtype),
        grid=(b_pad // tile,),
        in_specs=[
            pl.BlockSpec((tile, fin), lambda i: (i, 0)),
            # Constant index map: packed params stay VMEM-resident across steps.
            pl.BlockSpec(theta.shape, lambda i: (0, 0)),
        ],
        out_specs=pl.BlockSpec((fout, tile), lambda i: (0, i)),
        compiler_params=pltpu.CompilerParams(
            dimension_semantics=("parallel",)),
    )(x_pad, theta)

    # [Fout, B_pad] -> [B, Fout] (small output; transpose done by XLA outside).
    return out_fb[:, :B].T


def init_channel_decoder_params(key, input_length, layer_sizes):
    """nn.Linear-style init (U(-1/sqrt(fan_in), 1/sqrt(fan_in))), packed at init."""
    dims = (int(input_length), *[int(s) for s in layer_sizes])
    segs, n_rows, n_cols = _pack_layout(dims)
    theta = jnp.zeros((n_rows, n_cols), jnp.float32)
    for s in segs:
        key, kw, kb = jax.random.split(key, 3)
        bound = 1.0 / (s.fin ** 0.5)
        w = jax.random.uniform(kw, (s.fout, s.fin), jnp.float32, -bound, bound)
        b = jax.random.uniform(kb, (s.fout,), jnp.float32, -bound, bound)
        theta = theta.at[s.w_row:s.w_row + s.fout, :s.fin].set(w)
        theta = theta.at[s.brow_row, :s.fout].set(b)
        theta = theta.at[s.bcol_row:s.bcol_row + s.fout, 0].set(b)
    return {"dims": dims, "packed": theta}


def _reference_forward(params, x):
    segs, _, _ = _pack_layout(params["dims"])
    theta = params["packed"]
    n = len(segs)
    y = x
    for i, s in enumerate(segs):
        w = theta[s.w_row:s.w_row + s.fout, :s.fin]   # [Fout, Fin]
        b = theta[s.brow_row, :s.fout]                # [Fout]
        y = jnp.dot(y, w.T, precision=jax.lax.Precision.HIGHEST) + b
        y = jax.nn.sigmoid(y) if i == n - 1 else jnp.maximum(y, 0.0)
    return y


if __name__ == "__main__":
    root = jax.random.PRNGKey(0)
    kp, kx1, kx2 = jax.random.split(root, 3)

    input_length = 32
    layer_sizes = [64, 32, 16]
    params = init_channel_decoder_params(kp, input_length, layer_sizes)

    # 1) Small-batch / serving path: gridless, fully fused, packed params.
    x_small = jax.random.normal(kx1, (8, input_length), dtype=jnp.float32)
    out_small = jax.block_until_ready(channel_decoder_forward(params, x_small))
    ref_small = _reference_forward(params, x_small)
    assert out_small.shape == (8, layer_sizes[-1])
    assert jnp.allclose(out_small, ref_small, atol=2e-5, rtol=2e-5), \
        "serving-path mismatch"

    # 2) Large-batch / throughput path: batch-tiled, batch-on-lanes.  Batch is
    #    deliberately not a tile multiple (exercises padding) and gives >= 2
    #    grid steps for the parallel axis.
    big_batch = 1500
    x_big = jax.random.normal(kx2, (big_batch, input_length), dtype=jnp.float32)
    out_big = jax.block_until_ready(
        channel_decoder_forward(params, x_big, batch_tile=512))
    ref_big = _reference_forward(params, x_big)
    assert out_big.shape == (big_batch, layer_sizes[-1])
    assert jnp.allclose(out_big, ref_big, atol=2e-5, rtol=2e-5), \
        "throughput-path mismatch"

    print("KERNEL_OK")
</pallas_src>

<mosaic_0001>
module attributes {stable_mosaic.version = 11 : i64} {
  func.func @_mlp_row_major_kernel(%arg0: memref<8x32xf32, #tpu.memory_space<vmem>>, %arg1: memref<248x64xf32, #tpu.memory_space<vmem>>, %arg2: memref<8x16xf32, #tpu.memory_space<vmem>>) attributes {dimension_semantics = [], scalar_prefetch = 0 : i64, scratch_operands = 0 : i64, tpu.core_type = #tpu.core_type<tc>} {
    %c0 = arith.constant 0 : index
    %c0_0 = arith.constant 0 : index
    %0 = vector.load %arg0[%c0, %c0_0] : memref<8x32xf32, #tpu.memory_space<vmem>>, vector<8x32xf32>
    %c0_1 = arith.constant 0 : index
    %c0_2 = arith.constant 0 : index
    %1 = vector.load %arg1[%c0_1, %c0_2] : memref<248x64xf32, #tpu.memory_space<vmem>>, vector<64x32xf32>
    %c64 = arith.constant 64 : index
    %c0_3 = arith.constant 0 : index
    %2 = vector.load %arg1[%c64, %c0_3] : memref<248x64xf32, #tpu.memory_space<vmem>>, vector<1x64xf32>
    %cst = arith.constant dense<0.000000e+00> : vector<8x64xf32>
    %3 = tpu.matmul %0, %1, %cst {dimension_numbers = #tpu.dot_dimension_numbers<[1], [1], [0], [0], [0, 0, 1, 0], [], []>} : vector<8x32xf32>, vector<64x32xf32>, vector<8x64xf32> -> vector<8x64xf32>
    %4 = vector.broadcast %2 : vector<1x64xf32> to vector<8x64xf32>
    %5 = arith.addf %3, %4 : vector<8x64xf32>
    %cst_4 = arith.constant 0.000000e+00 : f32
    %6 = vector.broadcast %cst_4 : f32 to vector<8x64xf32>
    %7 = arith.maximumf %5, %6 : vector<8x64xf32>
    %c136 = arith.constant 136 : index
    %c0_5 = arith.constant 0 : index
    %8 = vector.load %arg1[%c136, %c0_5] : memref<248x64xf32, #tpu.memory_space<vmem>>, vector<32x64xf32>
    %c168 = arith.constant 168 : index
    %c0_6 = arith.constant 0 : index
    %9 = vector.load %arg1[%c168, %c0_6] : memref<248x64xf32, #tpu.memory_space<vmem>>, vector<1x32xf32>
    %cst_7 = arith.constant dense<0.000000e+00> : vector<8x32xf32>
    %10 = tpu.matmul %7, %8, %cst_7 {dimension_numbers = #tpu.dot_dimension_numbers<[1], [1], [0], [0], [0, 0, 1, 0], [], []>} : vector<8x64xf32>, vector<32x64xf32>, vector<8x32xf32> -> vector<8x32xf32>
    %11 = vector.broadcast %9 : vector<1x32xf32> to vector<8x32xf32>
    %12 = arith.addf %10, %11 : vector<8x32xf32>
    %cst_8 = arith.constant 0.000000e+00 : f32
    %13 = vector.broadcast %cst_8 : f32 to vector<8x32xf32>
    %14 = arith.maximumf %12, %13 : vector<8x32xf32>
    %c208 = arith.constant 208 : index
    %c0_9 = arith.constant 0 : index
    %15 = vector.load %arg1[%c208, %c0_9] : memref<248x64xf32, #tpu.memory_space<vmem>>, vector<16x32xf32>
    %c224 = arith.constant 224 : index
    %c0_10 = arith.constant 0 : index
    %16 = vector.load %arg1[%c224, %c0_10] : memref<248x64xf32, #tpu.memory_space<vmem>>, vector<1x16xf32>
    %cst_11 = arith.constant dense<0.000000e+00> : vector<8x16xf32>
    %17 = tpu.matmul %14, %15, %cst_11 {dimension_numbers = #tpu.dot_dimension_numbers<[1], [1], [0], [0], [0, 0, 1, 0], [], []>} : vector<8x32xf32>, vector<16x32xf32>, vector<8x16xf32> -> vector<8x16xf32>
    %18 = vector.broadcast %16 : vector<1x16xf32> to vector<8x16xf32>
    %19 = arith.addf %17, %18 : vector<8x16xf32>
    %20 = arith.negf %19 : vector<8x16xf32>
    %21 = math.exp %20 : vector<8x16xf32>
    %cst_12 = arith.constant 1.000000e+00 : f32
    %22 = vector.broadcast %cst_12 : f32 to vector<8x16xf32>
    %23 = arith.addf %22, %21 : vector<8x16xf32>
    %24 = arith.divf %22, %23 : vector<8x16xf32>
    %c0_13 = arith.constant 0 : index
    %c0_14 = arith.constant 0 : index
    %25 = vector.load %arg2[%c0_13, %c0_14] : memref<8x16xf32, #tpu.memory_space<vmem>>, vector<8x16xf32>
    tpu.vector_store %arg2[%c0_13, %c0_14], %24 {strides = array<i32>} : memref<8x16xf32, #tpu.memory_space<vmem>>, vector<8x16xf32>,
    return
  }
}

</mosaic_0001>

<llo_original>
// kernel: tpu_custom_call.1
$region0: #{tpu_custom_call.1}
  #allocation0 [shape = 'u32[]', space=smem, size = 0x4, offset = 0x4, fixed_abs, tag = 'smem constant byte address 0x4 - core index']
  #allocation1 [shape = 'u32[144,128]{1,0:T(1,128)}', space=vmem, size = 0x12000, scoped, tag = 'internal scratch']
  %s0 = inlined_call_operand.vmem [shape: f32[8,32], index: 0, kind: input, shape index: {}]
  %s1 = inlined_call_operand.vmem [shape: f32[248,64], index: 1, kind: input, shape index: {}]
  %s2 = inlined_call_operand.hbm [shape: f32[8,16], index: 2, kind: output, shape index: {}]
  %s3 = sld [smem:[#allocation0]]
  $region18: #{tpu_custom_call.1} parent=0
    _
  %s5 = ssub.s32 1, %s3
  %s6 = scalar_select 0, %s5, %s3
  $region1: #{tpu_custom_call.1} parent=0
    #allocation2 [shape = 'u8[4096]{0}', space=vmem, size = 0x1000, scoped, tag = 'output window, operand 0, single buffered']
    #allocation3 [shape = 's32[1]{0}', space=sflag, size = 0x4, scoped, tag = 'scoped memory for tpu_custom_call.1']
    %7 = vsyncpa [#allocation3], 0
    // Predicated region
    $region2: #{tpu_custom_call.1} parent=1 // pred_check
      _
    $region3: #{tpu_custom_call.1} parent=1 // pred_check_branch
      %9 = sbr.rel (0) target = $region5
    $region4: #{tpu_custom_call.1} parent=1 // pred_region
      _
    $region5: #{tpu_custom_call.1} parent=1 // pred_fallthru
      _
    // Predicated region
    $region6: #{tpu_custom_call.1} parent=1 // pred_check
      _
    $region7: #{tpu_custom_call.1} parent=1 // pred_check_branch
      %11 = sbr.rel (0) target = $region9
    $region8: #{tpu_custom_call.1} parent=1 // pred_region
      _
    $region9: #{tpu_custom_call.1} parent=1 // pred_fallthru
      _
    %v12 = vld [vmem:[%s0] sm:$0xff]
    %v13 = vld [vmem:[%s1] sm:$0xff]
    %v14 = vld [vmem:[%s1 + $0x8] sm:$0xff]
    %v15 = vld [vmem:[%s1 + $0x10] sm:$0xff]
    %v16 = vld [vmem:[%s1 + $0x18] sm:$0xff]
    %v17 = vld [vmem:[%s1 + $0x20] sm:$0xff]
    %v18 = vld [vmem:[%s1 + $0x28] sm:$0xff]
    %v19 = vld [vmem:[%s1 + $0x30] sm:$0xff]
    %v20 = vld [vmem:[%s1 + $0x38] sm:$0xff]
    %v21 = vld [vmem:[%s1 + $0x40] sm:$0x1]
    %v22 = vlaneseq
    %v23 = vshrl.u32 %v22, 7
    %v24 = vsub.s32 0, %v23
    %v25 = vrot.slane %v21, %v24
    %vm26 = vcmask 261120
    %v28 = vsel %vm26, %v12, 0
    %v31 = vsel %vm26, %v13, 0
    %v34 = vsel %vm26, %v14, 0
    %v37 = vsel %vm26, %v15, 0
    %v40 = vsel %vm26, %v16, 0
    %v43 = vsel %vm26, %v17, 0
    %v46 = vsel %vm26, %v18, 0
    %v49 = vsel %vm26, %v19, 0
    %v52 = vsel %vm26, %v20, 0
    %54 = vmatprep.subr.mxu0 0.0
    %55 = vmatpush1.xpose.msra.mxu0 %v31
    %56 = vmatprep.subr.mxu0 0.0
    %57 = vmatpush1.xpose.msra.mxu0 %v34
    %58 = vmatprep.subr.mxu0 0.0
    %59 = vmatpush1.xpose.msra.mxu0 %v37
    %60 = vmatprep.subr.mxu0 0.0
    %61 = vmatpush1.xpose.msra.mxu0 %v40
    %62 = vmatprep.subr.mxu0 0.0
    %63 = vmatpush1.xpose.msra.mxu0 %v43
    %64 = vmatprep.subr.mxu0 0.0
    %65 = vmatpush1.xpose.msra.mxu0 %v46
    %66 = vmatprep.subr.mxu0 0.0
    %67 = vmatpush1.xpose.msra.mxu0 %v49
    %68 = vmatprep.subr.mxu0 0.0
    %69 = vmatpush1.xpose.msra.mxu0 %v52
    %70 = vmatprep.subr.mxu0 0.0
    %71 = vmatpush1.xpose.msra.mxu0 0.0
    %72 = vmatprep.subr.mxu0 0.0
    %73 = vmatpush1.xpose.msra.mxu0 0.0
    %74 = vmatprep.subr.mxu0 0.0
    %75 = vmatpush1.xpose.msra.mxu0 0.0
    %76 = vmatprep.subr.mxu0 0.0
    %77 = vmatpush1.xpose.msra.mxu0 0.0
    %78 = vmatprep.subr.mxu0 0.0
    %79 = vmatpush1.xpose.msra.mxu0 0.0
    %80 = vmatprep.subr.mxu0 0.0
    %81 = vmatpush1.xpose.msra.mxu0 0.0
    %82 = vmatprep.subr.mxu0 0.0
    %83 = vmatpush1.xpose.msra.mxu0 0.0
    %84 = vmatprep.subr.mxu0 0.0
    %85 = vmatpush1.xpose.msra.mxu0 0.0
    %86 = vmatprep.subr.mxu0 0.0
    %87 = vmatpush1.xpose.msra.mxu0 0.0
    %88 = vmatprep.subr.mxu0 0.0
    %89 = vmatpush1.xpose.msra.mxu0 0.0
    %90 = vmatprep.subr.mxu0 0.0
    %91 = vmatpush1.xpose.msra.mxu0 0.0
    %92 = vmatprep.subr.mxu0 0.0
    %93 = vmatpush1.xpose.msra.mxu0 0.0
    %94 = vmatprep.subr.mxu0 0.0
    %95 = vmatpush1.xpose.msra.mxu0 0.0
    %96 = vmatprep.subr.mxu0 0.0
    %97 = vmatpush1.xpose.msra.mxu0 0.0
    %98 = vmatprep.subr.mxu0 0.0
    %99 = vmatpush1.xpose.msra.mxu0 0.0
    %100 = vmatprep.subr.mxu0 0.0
    %101 = vmatpush1.xpose.msra.mxu0 0.0
    %102 = vmatprep.subr.mxu0 0.0
    %103 = vmatpush1.xpose.msra.mxu0 0.0
    %104 = vmatprep.subr.mxu0 0.0
    %105 = vmatpush1.xpose.msra.mxu0 0.0
    %106 = vmatprep.subr.mxu0 0.0
    %107 = vmatpush1.xpose.msra.mxu0 0.0
    %108 = vmatprep.subr.mxu0 0.0
    %109 = vmatpush1.xpose.msra.mxu0 0.0
    %110 = vmatprep.subr.mxu0 0.0
    %111 = vmatpush1.xpose.msra.mxu0 0.0
    %112 = vmatprep.subr.mxu0 0.0
    %113 = vmatpush1.xpose.msra.mxu0 0.0
    %114 = vmatprep.subr.mxu0 0.0
    %115 = vmatpush1.xpose.msra.mxu0 0.0
    %116 = vmatprep.subr.mxu0 0.0
    %117 = vmatpush1.xpose.msra.mxu0 0.0
    %118 = vmatprep.mubr.f32.mxu0 0.0
    %119 = vmatmul.mubr.f32.gmra.mrb[0].mxu0 %v28
    %v120 = vpop.f32.mrb[0].mxu0
    %v121 = vadd.f32 %v25, %v120
    %v122 = vpop.f32.mrb[0].mxu0
    %123 = vdwg.mxu0
    %v124 = vmax.f32 %v121, 0.0
    %v125 = vld [vmem:[%s1 + $0x88] sm:$0xff]
    %v126 = vld [vmem:[%s1 + $0x90] sm:$0xff]
    %v127 = vld [vmem:[%s1 + $0x98] sm:$0xff]
    %v128 = vld [vmem:[%s1 + $0xa0] sm:$0xff]
    %v129 = vld [vmem:[%s1 + $0xa8] sm:$0x1]
    %v130 = vlaneseq
    %v131 = vshrl.u32 %v130, 7
    %v132 = vsub.s32 0, %v131
    %v133 = vrot.slane %v129, %v132
    %vm134 = vcmask 523264
    %v136 = vsel %vm134, %v124, 0
    %v139 = vsel %vm134, %v125, 0
    %v142 = vsel %vm134, %v126, 0
    %v145 = vsel %vm134, %v127, 0
    %v148 = vsel %vm134, %v128, 0
    %150 = vmatprep.subr.mxu0 0.0
    %151 = vmatpush1.xpose.msra.mxu0 %v139
    %152 = vmatprep.subr.mxu0 0.0
    %153 = vmatpush1.xpose.msra.mxu0 %v142
    %154 = vmatprep.subr.mxu0 0.0
    %155 = vmatpush1.xpose.msra.mxu0 %v145
    %156 = vmatprep.subr.mxu0 0.0
    %157 = vmatpush1.xpose.msra.mxu0 %v148
    %158 = vmatprep.subr.mxu0 0.0
    %159 = vmatpush1.xpose.msra.mxu0 0.0
    %160 = vmatprep.subr.mxu0 0.0
    %161 = vmatpush1.xpose.msra.mxu0 0.0
    %162 = vmatprep.subr.mxu0 0.0
    %163 = vmatpush1.xpose.msra.mxu0 0.0
    %164 = vmatprep.subr.mxu0 0.0
    %165 = vmatpush1.xpose.msra.mxu0 0.0
    %166 = vmatprep.subr.mxu0 0.0
    %167 = vmatpush1.xpose.msra.mxu0 0.0
    %168 = vmatprep.subr.mxu0 0.0
    %169 = vmatpush1.xpose.msra.mxu0 0.0
    %170 = vmatprep.subr.mxu0 0.0
    %171 = vmatpush1.xpose.msra.mxu0 0.0
    %172 = vmatprep.subr.mxu0 0.0
    %173 = vmatpush1.xpose.msra.mxu0 0.0
    %174 = vmatprep.subr.mxu0 0.0
    %175 = vmatpush1.xpose.msra.mxu0 0.0
    %176 = vmatprep.subr.mxu0 0.0
    %177 = vmatpush1.xpose.msra.mxu0 0.0
    %178 = vmatprep.subr.mxu0 0.0
    %179 = vmatpush1.xpose.msra.mxu0 0.0
    %180 = vmatprep.subr.mxu0 0.0
    %181 = vmatpush1.xpose.msra.mxu0 0.0
    %182 = vmatprep.subr.mxu0 0.0
    %183 = vmatpush1.xpose.msra.mxu0 0.0
    %184 = vmatprep.subr.mxu0 0.0
    %185 = vmatpush1.xpose.msra.mxu0 0.0
    %186 = vmatprep.subr.mxu0 0.0
    %187 = vmatpush1.xpose.msra.mxu0 0.0
    %188 = vmatprep.subr.mxu0 0.0
    %189 = vmatpush1.xpose.msra.mxu0 0.0
    %190 = vmatprep.subr.mxu0 0.0
    %191 = vmatpush1.xpose.msra.mxu0 0.0
    %192 = vmatprep.subr.mxu0 0.0
    %193 = vmatpush1.xpose.msra.mxu0 0.0
    %194 = vmatprep.subr.mxu0 0.0
    %195 = vmatpush1.xpose.msra.mxu0 0.0
    %196 = vmatprep.subr.mxu0 0.0
    %197 = vmatpush1.xpose.msra.mxu0 0.0
    %198 = vmatprep.subr.mxu0 0.0
    %199 = vmatpush1.xpose.msra.mxu0 0.0
    %200 = vmatprep.subr.mxu0 0.0
    %201 = vmatpush1.xpose.msra.mxu0 0.0
    %202 = vmatprep.subr.mxu0 0.0
    %203 = vmatpush1.xpose.msra.mxu0 0.0
    %204 = vmatprep.subr.mxu0 0.0
    %205 = vmatpush1.xpose.msra.mxu0 0.0
    %206 = vmatprep.subr.mxu0 0.0
    %207 = vmatpush1.xpose.msra.mxu0 0.0
    %208 = vmatprep.subr.mxu0 0.0
    %209 = vmatpush1.xpose.msra.mxu0 0.0
    %210 = vmatprep.subr.mxu0 0.0
    %211 = vmatpush1.xpose.msra.mxu0 0.0
    %212 = vmatprep.subr.mxu0 0.0
    %213 = vmatpush1.xpose.msra.mxu0 0.0
    %214 = vmatprep.mubr.f32.mxu0 0.0
    %215 = vmatmul.mubr.f32.gmra.mrb[0].mxu0 %v136
    %v216 = vpop.f32.mrb[0].mxu0
    %v217 = vadd.f32 %v133, %v216
    %v218 = vpop.f32.mrb[0].mxu0
    %219 = vdwg.mxu0
    %v220 = vmax.f32 %v217, 0.0
    %v221 = vld [vmem:[%s1 + $0xd0] sm:$0xff]
    %v222 = vld [vmem:[%s1 + $0xd8] sm:$0xff]
    %v223 = vld [vmem:[%s1 + $0xe0] sm:$0x1]
    %v224 = vlaneseq
    %v225 = vshrl.u32 %v224, 7
    %v226 = vsub.s32 0, %v225
    %v227 = vrot.slane %v223, %v226
    %v229 = vsel %vm26, %v220, 0
    %v232 = vsel %vm26, %v221, 0
    %v235 = vsel %vm26, %v222, 0
    %237 = vmatprep.subr.mxu0 0.0
    %238 = vmatpush1.xpose.msra.mxu0 %v232
    %239 = vmatprep.subr.mxu0 0.0
    %240 = vmatpush1.xpose.msra.mxu0 %v235
    %241 = vmatprep.subr.mxu0 0.0
    %242 = vmatpush1.xpose.msra.mxu0 0.0
    %243 = vmatprep.subr.mxu0 0.0
    %244 = vmatpush1.xpose.msra.mxu0 0.0
    %245 = vmatprep.subr.mxu0 0.0
    %246 = vmatpush1.xpose.msra.mxu0 0.0
    %247 = vmatprep.subr.mxu0 0.0
    %248 = vmatpush1.xpose.msra.mxu0 0.0
    %249 = vmatprep.subr.mxu0 0.0
    %250 = vmatpush1.xpose.msra.mxu0 0.0
    %251 = vmatprep.subr.mxu0 0.0
    %252 = vmatpush1.xpose.msra.mxu0 0.0
    %253 = vmatprep.subr.mxu0 0.0
    %254 = vmatpush1.xpose.msra.mxu0 0.0
    %255 = vmatprep.subr.mxu0 0.0
    %256 = vmatpush1.xpose.msra.mxu0 0.0
    %257 = vmatprep.subr.mxu0 0.0
    %258 = vmatpush1.xpose.msra.mxu0 0.0
    %259 = vmatprep.subr.mxu0 0.0
    %260 = vmatpush1.xpose.msra.mxu0 0.0
    %261 = vmatprep.subr.mxu0 0.0
    %262 = vmatpush1.xpose.msra.mxu0 0.0
    %263 = vmatprep.subr.mxu0 0.0
    %264 = vmatpush1.xpose.msra.mxu0 0.0
    %265 = vmatprep.subr.mxu0 0.0
    %266 = vmatpush1.xpose.msra.mxu0 0.0
    %267 = vmatprep.subr.mxu0 0.0
    %268 = vmatpush1.xpose.msra.mxu0 0.0
    %269 = vmatprep.subr.mxu0 0.0
    %270 = vmatpush1.xpose.msra.mxu0 0.0
    %271 = vmatprep.subr.mxu0 0.0
    %272 = vmatpush1.xpose.msra.mxu0 0.0
    %273 = vmatprep.subr.mxu0 0.0
    %274 = vmatpush1.xpose.msra.mxu0 0.0
    %275 = vmatprep.subr.mxu0 0.0
    %276 = vmatpush1.xpose.msra.mxu0 0.0
    %277 = vmatprep.subr.mxu0 0.0
    %278 = vmatpush1.xpose.msra.mxu0 0.0
    %279 = vmatprep.subr.mxu0 0.0
    %280 = vmatpush1.xpose.msra.mxu0 0.0
    %281 = vmatprep.subr.mxu0 0.0
    %282 = vmatpush1.xpose.msra.mxu0 0.0
    %283 = vmatprep.subr.mxu0 0.0
    %284 = vmatpush1.xpose.msra.mxu0 0.0
    %285 = vmatprep.subr.mxu0 0.0
    %286 = vmatpush1.xpose.msra.mxu0 0.0
    %287 = vmatprep.subr.mxu0 0.0
    %288 = vmatpush1.xpose.msra.mxu0 0.0
    %289 = vmatprep.subr.mxu0 0.0
    %290 = vmatpush1.xpose.msra.mxu0 0.0
    %291 = vmatprep.subr.mxu0 0.0
    %292 = vmatpush1.xpose.msra.mxu0 0.0
    %293 = vmatprep.subr.mxu0 0.0
    %294 = vmatpush1.xpose.msra.mxu0 0.0
    %295 = vmatprep.subr.mxu0 0.0
    %296 = vmatpush1.xpose.msra.mxu0 0.0
    %297 = vmatprep.subr.mxu0 0.0
    %298 = vmatpush1.xpose.msra.mxu0 0.0
    %299 = vmatprep.subr.mxu0 0.0
    %300 = vmatpush1.xpose.msra.mxu0 0.0
    %301 = vmatprep.mubr.f32.mxu0 0.0
    %302 = vmatmul.mubr.f32.gmra.mrb[0].mxu0 %v229
    %v303 = vpop.f32.mrb[0].mxu0
    %v304 = vadd.f32 %v227, %v303
    %v305 = vpop.f32.mrb[0].mxu0
    %306 = vdwg.mxu0
    %v307 = vxor.u32 %v304, 2147483648
    %v308 = vmul.f32 %v307, 1.442695
    %v309 = vpow.pop %v308
    %v310 = vadd.f32 %v309, 1.0
    %v311 = vrcp.pop %v310
    %v312 = vmul.f32 1.0, %v311
    %vm313 = vcmask 130048
    %314 = vst.msk [vmem:[#allocation2] sm:$0xff] %vm313, %v312
    // Predicated region
    $region10: #{tpu_custom_call.1} parent=1 // pred_check
      _
    $region11: #{tpu_custom_call.1} parent=1 // pred_check_branch
      %316 = sbr.rel (0) target = $region13
    $region12: #{tpu_custom_call.1} parent=1 // pred_region
      %s318 = ssub.s32 128, 128
      %319 = vsyncadd [#allocation3], %s318
      %s321 = sshll.u32 [#allocation2], 4
      %s322 = int_to_ptr.vmem [resolvable:$true] %s321
      %324 = dma.vmem_to_hbm [thread:$0]  %s322, 128, %s2, [#allocation3]
    $region13: #{tpu_custom_call.1} parent=1 // pred_fallthru
      _
    // Predicated region
    $region14: #{tpu_custom_call.1} parent=1 // pred_check
      _
    $region15: #{tpu_custom_call.1} parent=1 // pred_check_branch
      %326 = sbr.rel (0) target = $region17
    $region16: #{tpu_custom_call.1} parent=1 // pred_region
      %327 = dma.done [#allocation3], 128
    $region17: #{tpu_custom_call.1} parent=1 // pred_fallthru
      _
    %328 = vsyncpa [#allocation3], 1

</llo_original>
